<compile_context>
chip_gen: v5e
topology: v5e:2x2
jax: 0.10.0
libtpu: 0.0.40
codegen_flags: <defaults>
</compile_context>

<pallas_src>
import jax
import jax.numpy as jnp
from jax.experimental import pallas as pl
from jax.experimental.pallas import tpu as pltpu


def _point_attention_kernel(f1_ref, f2_ref, f3_ref,
                            w1_ref, b1_ref, w2_ref, b2_ref,
                            out_ref):
    # Tiles (N-last, lane-dense layout):
    #   f*_ref  : (1, C, tn)   input dtype (f32 or bf16)
    #   w1_ref  : (3*Cr, C)    stacked over branches, BN folded, f32
    #   b1_ref  : (3*Cr, 1)
    #   w2_ref  : (3, 3*Cr)    block-diagonal second conv, BN folded
    #   b2_ref  : (3, 1)
    #   out_ref : (1, C, tn)
    f1 = f1_ref[0]                                   # (C, tn)
    f2 = f2_ref[0]
    f3 = f3_ref[0]
    # feature_U in f32 (exact for f32 inputs; promotes bf16 inputs).
    u = (f1.astype(jnp.float32) + f2.astype(jnp.float32)
         + f3.astype(jnp.float32))                   # (C, tn)

    # Branch score path: both 1x1 convs as lane-dense MXU matmuls.
    h = jnp.dot(w1_ref[...], u, preferred_element_type=jnp.float32)   # (3Cr, tn)
    h = jnp.maximum(h + b1_ref[...], 0.0)                             # ReLU
    s = jnp.dot(w2_ref[...], h, preferred_element_type=jnp.float32)   # (3, tn)
    s = s + b2_ref[...]

    # Softmax over the 3 branches, elementwise on full-width rows
    # (no lane-sparse concat, no cross-lane reductions).
    s0 = s[0:1, :]
    s1 = s[1:2, :]
    s2 = s[2:3, :]
    mx = jnp.maximum(jnp.maximum(s0, s1), s2)
    e0 = jnp.exp(s0 - mx)
    e1 = jnp.exp(s1 - mx)
    e2 = jnp.exp(s2 - mx)
    # Denominator >= 1 always (max-subtracted), so approx reciprocal is safe;
    # routes the divide to the EUP slot.
    inv = pl.reciprocal(e0 + e1 + e2, approx=True)   # (1, tn)

    # Weighted sum: (1, tn) * (C, tn) sublane broadcast; accumulate in f32.
    out = (e0 * inv) * f1 + (e1 * inv) * f2 + (e2 * inv) * f3
    out_ref[0] = out.astype(out_ref.dtype)


def _fold_bn(w, b, gamma, beta, mean, var, eps=1e-5):
    """Fold BatchNorm1d (inference) into a 1x1 Conv1d.

    w: (out, in)  b: (out,)  -> W_eff: (out, in), b_eff: (out,)
    so that  y = W_eff @ x + b_eff  ==  BN(Conv(x))  per spatial point.
    """
    scale = gamma / jnp.sqrt(var + eps)              # (out,)
    w_eff = w * scale[:, None]                       # (out, in)
    b_eff = (b - mean) * scale + beta                # (out,)
    return w_eff, b_eff


def _vmem_capacity_bytes():
    """Per-core VMEM capacity; conservative v7x fallback if query fails."""
    try:
        cap = int(getattr(pltpu.get_tpu_info(), "vmem_capacity_bytes"))
        if cap > 0:
            return cap
    except Exception:
        pass
    return 64 << 20


def _choose_tile_n(N_pad, B, C, Cr, itemsize, vmem_budget, n_in_buf,
                   max_tile_n=None):
    """Pick the N-tile width (multiple of 128 dividing the padded N)."""
    # VMEM bytes per lane-column of a tile:
    #   pipelined feature inputs (n_in_buf bufs x 3 arrays) + output (2 bufs),
    #   plus f32 intermediates: u (C) + h (3Cr) + ~3 temp rows of C.
    per_col = (n_in_buf * 3 + 2) * C * itemsize + (4 * C + 3 * Cr) * 4
    tn_vmem = max(128, (vmem_budget // per_col) // 128 * 128)

    # Keep ~8 grid steps so both v7x TensorCores get work ...
    steps_per_batch = max(1, -(-8 // B))             # ceil(8 / B)
    tn_grid = max(128, (N_pad // steps_per_batch) // 128 * 128)

    # ... but never shrink a step below ~4 MiB of HBM traffic: the ~0.35 us
    # per-step pipeline overhead would otherwise dominate this mem-bound kernel.
    cols_4mib = -(-(4 << 20) // ((4 * C) * itemsize))
    tn_traffic = min(N_pad, max(128, -(-cols_4mib // 128) * 128))

    tn_cap = min(tn_vmem, max(tn_grid, tn_traffic), N_pad)
    if max_tile_n is not None:
        tn_cap = min(tn_cap, max(128, (max_tile_n // 128) * 128))

    # Largest multiple of 128 <= cap that divides the (128-padded) N.
    tn = max(128, (tn_cap // 128) * 128)
    while N_pad % tn != 0:
        tn -= 128
    return tn


def point_attention(f1, f2, f3, params, *, max_tile_n=None):
    """f1, f2, f3: (B, C, N), f32 or bf16 (PyTorch NCW layout). Returns (B, C, N)."""
    B, C, N = f1.shape
    dtype = f1.dtype
    itemsize = jnp.dtype(dtype).itemsize

    # Fold BN into the two convs of each branch; stack / block-diagonalize.
    w1_rows, b1_rows, w2_rows, b2_rows = [], [], [], []
    for p in params:                                  # one dict per branch
        w1e, b1e = _fold_bn(p["w1"], p["b1"], p["g1"], p["be1"], p["m1"], p["v1"])
        w2e, b2e = _fold_bn(p["w2"], p["b2"], p["g2"], p["be2"], p["m2"], p["v2"])
        w1_rows.append(w1e)                           # (Cr, C)
        b1_rows.append(b1e)                           # (Cr,)
        w2_rows.append(w2e[0])                        # (Cr,)  single out channel
        b2_rows.append(b2e)                           # (1,)
    Cr = w1_rows[0].shape[0]

    w1 = jnp.concatenate(w1_rows, axis=0).astype(jnp.float32)           # (3Cr, C)
    b1 = jnp.concatenate(b1_rows, axis=0)[:, None].astype(jnp.float32)  # (3Cr, 1)
    w2 = jnp.zeros((3, 3 * Cr), jnp.float32)
    for i in range(3):                                # block-diagonal second conv
        w2 = w2.at[i, i * Cr:(i + 1) * Cr].set(w2_rows[i])
    b2 = jnp.stack(b2_rows, axis=0).astype(jnp.float32)                 # (3, 1)

    # Pad N to a multiple of 128: keeps stores unmasked and tiling bounded
    # (replaces the old full-extent-block fallback). Padded columns are
    # computed independently and sliced off below.
    N_pad = -(-N // 128) * 128
    if N_pad != N:
        pad = ((0, 0), (0, 0), (0, N_pad - N))
        f1 = jnp.pad(f1, pad)
        f2 = jnp.pad(f2, pad)
        f3 = jnp.pad(f3, pad)

    capacity = _vmem_capacity_bytes()
    vmem_budget = int(0.65 * capacity)                # headroom for v7x's 64 MiB
    n_in_buf = 3                                      # budget for triple-buffered inputs
    tn = _choose_tile_n(N_pad, B, C, Cr, itemsize, vmem_budget, n_in_buf,
                        max_tile_n=max_tile_n)
    grid = (B, N_pad // tn)
    total_steps = B * (N_pad // tn)

    # Explicit VMEM estimate (buffers + intermediates + resident weights).
    weight_bytes = int(w1.size + b1.size + w2.size + b2.size) * 4
    per_col = (n_in_buf * 3 + 2) * C * itemsize + (4 * C + 3 * Cr) * 4
    est_bytes = tn * per_col + weight_bytes
    vmem_limit = int(min(capacity, max(2 * est_bytes, 32 << 20)))

    _feat_map = lambda b, n: (b, 0, n)
    feat_spec = pl.BlockSpec((1, C, tn), _feat_map)
    if total_steps >= 4:
        # Extra input buffer hides HBM latency jitter (2 TCs contend on v7x).
        try:
            feat_spec = pl.BlockSpec((1, C, tn), _feat_map,
                                     pipeline_mode=pl.Buffered(3))
        except Exception:
            feat_spec = pl.BlockSpec((1, C, tn), _feat_map)
    out_spec = pl.BlockSpec((1, C, tn), _feat_map)

    # Advisory cost hint for XLA's scheduler (bandwidth-heavy custom call).
    flops_per_pt = 2 * (3 * Cr) * C + 2 * 3 * (3 * Cr) + 16 * C
    cost = pl.CostEstimate(
        flops=int(B * N_pad * flops_per_pt),
        transcendentals=int(3 * B * N_pad),
        bytes_accessed=int(4 * B * C * N_pad * itemsize + weight_bytes))

    out = pl.pallas_call(
        _point_attention_kernel,
        out_shape=jax.ShapeDtypeStruct((B, C, N_pad), dtype),
        grid=grid,
        in_specs=[
            feat_spec, feat_spec, feat_spec,
            pl.BlockSpec((3 * Cr, C), lambda b, n: (0, 0)),   # resident weights
            pl.BlockSpec((3 * Cr, 1), lambda b, n: (0, 0)),
            pl.BlockSpec((3, 3 * Cr), lambda b, n: (0, 0)),
            pl.BlockSpec((3, 1), lambda b, n: (0, 0)),
        ],
        out_specs=out_spec,
        compiler_params=pltpu.CompilerParams(
            dimension_semantics=("parallel", "parallel"),
            vmem_limit_bytes=vmem_limit),
        cost_estimate=cost,
    )(f1, f2, f3, w1, b1, w2, b2)

    if N_pad != N:
        out = out[:, :, :N]
    return out


def _reference(f1, f2, f3, params):
    """Pure-JAX reference of the same (inference-BN) forward."""
    u = f1 + f2 + f3                                  # (B, C, N)
    scores = []
    for p in params:
        w1e, b1e = _fold_bn(p["w1"], p["b1"], p["g1"], p["be1"], p["m1"], p["v1"])
        w2e, b2e = _fold_bn(p["w2"], p["b2"], p["g2"], p["be2"], p["m2"], p["v2"])
        h = jnp.einsum("bcn,rc->brn", u, w1e) + b1e[None, :, None]
        h = jnp.maximum(h, 0.0)
        s = jnp.einsum("brn,or->bon", h, w2e) + b2e[None, :, None]   # (B,1,N)
        scores.append(s)
    logits = jnp.concatenate(scores, axis=1)          # (B, 3, N)
    m = jax.nn.softmax(logits, axis=1)
    feats = jnp.stack([f1, f2, f3], axis=1)           # (B, 3, C, N)
    return jnp.sum(m[:, :, None, :] * feats, axis=1)


def _init_branch_params(key, C, Cr):
    ks = jax.random.split(key, 8)
    return {
        # Conv1d(C, Cr, 1): weight (Cr, C), bias (Cr,)
        "w1": jax.random.normal(ks[0], (Cr, C), jnp.float32) * 0.2,
        "b1": jax.random.normal(ks[1], (Cr,), jnp.float32) * 0.1,
        # BatchNorm1d(Cr)
        "g1": 1.0 + 0.1 * jax.random.normal(ks[2], (Cr,), jnp.float32),
        "be1": 0.1 * jax.random.normal(ks[3], (Cr,), jnp.float32),
        "m1": 0.1 * jax.random.normal(ks[4], (Cr,), jnp.float32),
        "v1": 1.0 + 0.1 * jnp.abs(jax.random.normal(ks[5], (Cr,), jnp.float32)),
        # Conv1d(Cr, 1, 1): weight (1, Cr), bias (1,)
        "w2": jax.random.normal(ks[6], (1, Cr), jnp.float32) * 0.2,
        "b2": jax.random.normal(ks[7], (1,), jnp.float32) * 0.1,
        # BatchNorm1d(1)
        "g2": jnp.ones((1,), jnp.float32),
        "be2": jnp.zeros((1,), jnp.float32),
        "m2": jnp.zeros((1,), jnp.float32),
        "v2": jnp.ones((1,), jnp.float32),
    }


if __name__ == "__main__":
    B, C, N = 2, 32, 512            # channel=32, reduction=4 -> Cr=8, 512 points
    reduction = 4
    Cr = C // reduction

    key = jax.random.PRNGKey(0)
    k_f1, k_f2, k_f3, k_p1, k_p2, k_p3 = jax.random.split(key, 6)

    f1 = jax.random.normal(k_f1, (B, C, N), jnp.float32)
    f2 = jax.random.normal(k_f2, (B, C, N), jnp.float32)
    f3 = jax.random.normal(k_f3, (B, C, N), jnp.float32)

    params = [_init_branch_params(k, C, Cr) for k in (k_p1, k_p2, k_p3)]

    ref = _reference(f1, f2, f3, params)

    # 1) Auto tile selection (tn sized from VMEM budget / per-step traffic).
    out = jax.block_until_ready(point_attention(f1, f2, f3, params))
    assert out.shape == (B, C, N)
    assert jnp.allclose(out, ref, atol=5e-3, rtol=5e-3), "mismatch (auto tile)"

    # 2) Forced small tile: exercises multi-step grid + extra input buffering.
    out_t = jax.block_until_ready(point_attention(f1, f2, f3, params,
                                                  max_tile_n=128))
    assert jnp.allclose(out_t, ref, atol=5e-3, rtol=5e-3), "mismatch (tiled)"

    # 3) N not a multiple of 128: exercises wrapper-side padding path.
    N2 = 200
    out_p = jax.block_until_ready(
        point_attention(f1[:, :, :N2], f2[:, :, :N2], f3[:, :, :N2], params))
    ref_p = _reference(f1[:, :, :N2], f2[:, :, :N2], f3[:, :, :N2], params)
    assert out_p.shape == (B, C, N2)
    assert jnp.allclose(out_p, ref_p, atol=5e-3, rtol=5e-3), "mismatch (padded N)"

    # 4) bf16 I/O path (halves HBM traffic on this bandwidth-bound kernel).
    f1b = f1.astype(jnp.bfloat16)
    f2b = f2.astype(jnp.bfloat16)
    f3b = f3.astype(jnp.bfloat16)
    out_bf = jax.block_until_ready(point_attention(f1b, f2b, f3b, params))
    ref_bf = _reference(f1b.astype(jnp.float32), f2b.astype(jnp.float32),
                        f3b.astype(jnp.float32), params)
    assert out_bf.dtype == jnp.bfloat16
    assert jnp.allclose(out_bf.astype(jnp.float32), ref_bf,
                        atol=3e-2, rtol=3e-2), "mismatch (bf16 I/O)"

    print("KERNEL_OK")
</pallas_src>

<mosaic_0001>
module attributes {stable_mosaic.version = 11 : i64} {
  func.func @_point_attention_kernel(%arg0: i32, %arg1: i32, %arg2: memref<1x32x512xf32, #tpu.memory_space<vmem>>, %arg3: memref<1x32x512xf32, #tpu.memory_space<vmem>>, %arg4: memref<1x32x512xf32, #tpu.memory_space<vmem>>, %arg5: memref<24x32xf32, #tpu.memory_space<vmem>>, %arg6: memref<24x1xf32, #tpu.memory_space<vmem>>, %arg7: memref<3x24xf32, #tpu.memory_space<vmem>>, %arg8: memref<3x1xf32, #tpu.memory_space<vmem>>, %arg9: memref<1x32x512xf32, #tpu.memory_space<vmem>>) attributes {dimension_semantics = [#tpu.dimension_semantics<parallel>, #tpu.dimension_semantics<parallel>], iteration_bounds = array<i64: 2, 1>, scalar_prefetch = 0 : i64, scratch_operands = 0 : i64, tpu.core_type = #tpu.core_type<tc>, window_params = [{transform_indices = @transform_0, window_bounds = array<i64: 1, 32, 512>}, {transform_indices = @transform_1, window_bounds = array<i64: 1, 32, 512>}, {transform_indices = @transform_2, window_bounds = array<i64: 1, 32, 512>}, {pipeline_mode = #tpu.pipeline_mode<synchronous>, transform_indices = @transform_3, window_bounds = array<i64: 24, 32>}, {pipeline_mode = #tpu.pipeline_mode<synchronous>, transform_indices = @transform_4, window_bounds = array<i64: 24, 1>}, {pipeline_mode = #tpu.pipeline_mode<synchronous>, transform_indices = @transform_5, window_bounds = array<i64: 3, 24>}, {pipeline_mode = #tpu.pipeline_mode<synchronous>, transform_indices = @transform_6, window_bounds = array<i64: 3, 1>}, {transform_indices = @transform_7, window_bounds = array<i64: 1, 32, 512>}]} {
    %c0 = arith.constant 0 : index
    %c0_0 = arith.constant 0 : index
    %c0_1 = arith.constant 0 : index
    %0 = vector.load %arg2[%c0, %c0_0, %c0_1] : memref<1x32x512xf32, #tpu.memory_space<vmem>>, vector<1x32x512xf32>
    %1 = vector.shape_cast %0 : vector<1x32x512xf32> to vector<32x512xf32>
    %c0_2 = arith.constant 0 : index
    %c0_3 = arith.constant 0 : index
    %c0_4 = arith.constant 0 : index
    %2 = vector.load %arg3[%c0_2, %c0_3, %c0_4] : memref<1x32x512xf32, #tpu.memory_space<vmem>>, vector<1x32x512xf32>
    %3 = vector.shape_cast %2 : vector<1x32x512xf32> to vector<32x512xf32>
    %c0_5 = arith.constant 0 : index
    %c0_6 = arith.constant 0 : index
    %c0_7 = arith.constant 0 : index
    %4 = vector.load %arg4[%c0_5, %c0_6, %c0_7] : memref<1x32x512xf32, #tpu.memory_space<vmem>>, vector<1x32x512xf32>
    %5 = vector.shape_cast %4 : vector<1x32x512xf32> to vector<32x512xf32>
    %6 = arith.addf %1, %3 : vector<32x512xf32>
    %7 = arith.addf %6, %5 : vector<32x512xf32>
    %c0_8 = arith.constant 0 : index
    %c0_9 = arith.constant 0 : index
    %8 = vector.load %arg5[%c0_8, %c0_9] : memref<24x32xf32, #tpu.memory_space<vmem>>, vector<24x32xf32>
    %cst = arith.constant dense<0.000000e+00> : vector<24x512xf32>
    %9 = tpu.matmul %8, %7, %cst {dimension_numbers = #tpu.dot_dimension_numbers<[1], [0], [0], [1], [0, 0, 1, 1], [], []>} : vector<24x32xf32>, vector<32x512xf32>, vector<24x512xf32> -> vector<24x512xf32>
    %c0_10 = arith.constant 0 : index
    %c0_11 = arith.constant 0 : index
    %10 = vector.load %arg6[%c0_10, %c0_11] : memref<24x1xf32, #tpu.memory_space<vmem>>, vector<24x1xf32>
    %11 = vector.broadcast %10 : vector<24x1xf32> to vector<24x512xf32>
    %12 = arith.addf %9, %11 : vector<24x512xf32>
    %cst_12 = arith.constant 0.000000e+00 : f32
    %13 = vector.broadcast %cst_12 : f32 to vector<24x512xf32>
    %14 = arith.maximumf %12, %13 : vector<24x512xf32>
    %c0_13 = arith.constant 0 : index
    %c0_14 = arith.constant 0 : index
    %15 = vector.load %arg7[%c0_13, %c0_14] : memref<3x24xf32, #tpu.memory_space<vmem>>, vector<3x24xf32>
    %cst_15 = arith.constant dense<0.000000e+00> : vector<3x512xf32>
    %16 = tpu.matmul %15, %14, %cst_15 {dimension_numbers = #tpu.dot_dimension_numbers<[1], [0], [0], [1], [0, 0, 1, 1], [], []>} : vector<3x24xf32>, vector<24x512xf32>, vector<3x512xf32> -> vector<3x512xf32>
    %c0_16 = arith.constant 0 : index
    %c0_17 = arith.constant 0 : index
    %17 = vector.load %arg8[%c0_16, %c0_17] : memref<3x1xf32, #tpu.memory_space<vmem>>, vector<3x1xf32>
    %18 = vector.broadcast %17 : vector<3x1xf32> to vector<3x512xf32>
    %19 = arith.addf %16, %18 : vector<3x512xf32>
    %20 = vector.extract_strided_slice %19 {offsets = [0, 0], sizes = [1, 512], strides = [1, 1]} : vector<3x512xf32> to vector<1x512xf32>
    %21 = vector.extract_strided_slice %19 {offsets = [1, 0], sizes = [1, 512], strides = [1, 1]} : vector<3x512xf32> to vector<1x512xf32>
    %22 = vector.extract_strided_slice %19 {offsets = [2, 0], sizes = [1, 512], strides = [1, 1]} : vector<3x512xf32> to vector<1x512xf32>
    %23 = arith.maximumf %20, %21 : vector<1x512xf32>
    %24 = arith.maximumf %23, %22 : vector<1x512xf32>
    %25 = arith.subf %20, %24 : vector<1x512xf32>
    %26 = math.exp %25 : vector<1x512xf32>
    %27 = arith.subf %21, %24 : vector<1x512xf32>
    %28 = math.exp %27 : vector<1x512xf32>
    %29 = arith.subf %22, %24 : vector<1x512xf32>
    %30 = math.exp %29 : vector<1x512xf32>
    %31 = arith.addf %26, %28 : vector<1x512xf32>
    %32 = arith.addf %31, %30 : vector<1x512xf32>
    %33 = tpu.reciprocal %32 {approx = true} : vector<1x512xf32> -> vector<1x512xf32>
    %34 = arith.mulf %26, %33 : vector<1x512xf32>
    %35 = vector.broadcast %34 : vector<1x512xf32> to vector<32x512xf32>
    %36 = arith.mulf %35, %1 : vector<32x512xf32>
    %37 = arith.mulf %28, %33 : vector<1x512xf32>
    %38 = vector.broadcast %37 : vector<1x512xf32> to vector<32x512xf32>
    %39 = arith.mulf %38, %3 : vector<32x512xf32>
    %40 = arith.addf %36, %39 : vector<32x512xf32>
    %41 = arith.mulf %30, %33 : vector<1x512xf32>
    %42 = vector.broadcast %41 : vector<1x512xf32> to vector<32x512xf32>
    %43 = arith.mulf %42, %5 : vector<32x512xf32>
    %44 = arith.addf %40, %43 : vector<32x512xf32>
    %c0_18 = arith.constant 0 : index
    %c0_19 = arith.constant 0 : index
    %c0_20 = arith.constant 0 : index
    %45 = vector.load %arg9[%c0_18, %c0_19, %c0_20] : memref<1x32x512xf32, #tpu.memory_space<vmem>>, vector<1x32x512xf32>
    %46 = vector.shape_cast %45 : vector<1x32x512xf32> to vector<32x512xf32>
    %47 = vector.shape_cast %44 : vector<32x512xf32> to vector<1x32x512xf32>
    tpu.vector_store %arg9[%c0_18, %c0_19, %c0_20], %47 {strides = array<i32>} : memref<1x32x512xf32, #tpu.memory_space<vmem>>, vector<1x32x512xf32>,
    return
  }
  func.func @transform_0(%arg0: i32, %arg1: i32) -> (i32, i32, i32) {
    %c0_i32 = arith.constant 0 : i32
    %c0_i32_0 = arith.constant 0 : i32
    return %arg0, %c0_i32, %arg1 : i32, i32, i32
  }
  func.func @transform_1(%arg0: i32, %arg1: i32) -> (i32, i32, i32) {
    %c0_i32 = arith.constant 0 : i32
    %c0_i32_0 = arith.constant 0 : i32
    return %arg0, %c0_i32, %arg1 : i32, i32, i32
  }
  func.func @transform_2(%arg0: i32, %arg1: i32) -> (i32, i32, i32) {
    %c0_i32 = arith.constant 0 : i32
    %c0_i32_0 = arith.constant 0 : i32
    return %arg0, %c0_i32, %arg1 : i32, i32, i32
  }
  func.func @transform_3(%arg0: i32, %arg1: i32) -> (i32, i32) {
    %c0_i32 = arith.constant 0 : i32
    %c0_i32_0 = arith.constant 0 : i32
    %c0_i32_1 = arith.constant 0 : i32
    return %c0_i32, %c0_i32_0 : i32, i32
  }
  func.func @transform_4(%arg0: i32, %arg1: i32) -> (i32, i32) {
    %c0_i32 = arith.constant 0 : i32
    %c0_i32_0 = arith.constant 0 : i32
    %c0_i32_1 = arith.constant 0 : i32
    return %c0_i32, %c0_i32_0 : i32, i32
  }
  func.func @transform_5(%arg0: i32, %arg1: i32) -> (i32, i32) {
    %c0_i32 = arith.constant 0 : i32
    %c0_i32_0 = arith.constant 0 : i32
    %c0_i32_1 = arith.constant 0 : i32
    return %c0_i32, %c0_i32_0 : i32, i32
  }
  func.func @transform_6(%arg0: i32, %arg1: i32) -> (i32, i32) {
    %c0_i32 = arith.constant 0 : i32
    %c0_i32_0 = arith.constant 0 : i32
    %c0_i32_1 = arith.constant 0 : i32
    return %c0_i32, %c0_i32_0 : i32, i32
  }
  func.func @transform_7(%arg0: i32, %arg1: i32) -> (i32, i32, i32) {
    %c0_i32 = arith.constant 0 : i32
    %c0_i32_0 = arith.constant 0 : i32
    return %arg0, %c0_i32, %arg1 : i32, i32, i32
  }
}

</mosaic_0001>

<llo_original>
// kernel: tpu_custom_call.1
$region0: #{tpu_custom_call.1}
  #allocation0 [shape = 'u32[]', space=smem, size = 0x4, offset = 0x4, fixed_abs, tag = 'smem constant byte address 0x4 - core index']
  #allocation1 [shape = 'u32[72,128]{1,0:T(1,128)}', space=vmem, size = 0x9000, scoped, tag = 'internal scratch']
  %s0 = inlined_call_operand.hbm [shape: f32[2,32,512], index: 0, kind: input, shape index: {}]
  %s1 = inlined_call_operand.hbm [shape: f32[2,32,512], index: 1, kind: input, shape index: {}]
  %s2 = inlined_call_operand.hbm [shape: f32[2,32,512], index: 2, kind: input, shape index: {}]
  %s3 = inlined_call_operand.vmem [shape: f32[24,32], index: 3, kind: input, shape index: {}]
  %s4 = inlined_call_operand.vmem [shape: f32[24,1], index: 4, kind: input, shape index: {}]
  %s5 = inlined_call_operand.vmem [shape: f32[3,24], index: 5, kind: input, shape index: {}]
  %s6 = inlined_call_operand.vmem [shape: f32[3,1], index: 6, kind: input, shape index: {}]
  %s7 = inlined_call_operand.hbm [shape: f32[2,32,512], index: 7, kind: output, shape index: {}]
  %s8 = sld [smem:[#allocation0]]
  $region73: #{tpu_custom_call.1} parent=0
    _
  %s10 = ssub.s32 1, %s8
  %s11 = scalar_select 0, %s10, %s8
  $region1: #{tpu_custom_call.1} parent=0
    #allocation2 [shape = 'u8[131072]{0}', space=vmem, size = 0x20000, scoped, tag = 'input window, operand 0']
    #allocation3 [shape = 's32[2]{0}', space=sflag, size = 0x8, scoped, tag = 'scoped memory for tpu_custom_call.1']
    #allocation4 [shape = 's32[2]{0}', space=sflag, size = 0x8, scoped, tag = 'scoped memory for tpu_custom_call.1']
    #allocation5 [shape = 'u8[131072]{0}', space=vmem, size = 0x20000, scoped, tag = 'input window, operand 1']
    #allocation6 [shape = 's32[2]{0}', space=sflag, size = 0x8, scoped, tag = 'scoped memory for tpu_custom_call.1']
    #allocation7 [shape = 'u8[131072]{0}', space=vmem, size = 0x20000, scoped, tag = 'input window, operand 2']
    #allocation8 [shape = 'u8[131072]{0}', space=vmem, size = 0x20000, scoped, tag = 'output window, operand 0']
    %12 = vsyncpa [#allocation3], 0
    %s13 = scalar_lea.sflag [#allocation3], 1
    %14 = vsyncpa %s13, 0
    %15 = vsyncpa [#allocation6], 0
    %s16 = scalar_lea.sflag [#allocation6], 1
    %17 = vsyncpa %s16, 0
    %18 = vsyncpa [#allocation4], 0
    %s19 = scalar_lea.sflag [#allocation4], 1
    %20 = vsyncpa %s19, 0
    loop: start=0, step=1, limit=4
    $region2: #{tpu_custom_call.1} parent=1 // loop_pre_header
      _
    $region3: #{tpu_custom_call.1} parent=1 // loop_header
      %s22 = sphi 0, %s26
      %p23 = scmp.ge.s32.totalorder %s22, 4
      %s29 = sphi 0, %s41
      %s30 = sphi 0, %s37
      %s31 = sphi 0, %s29
      %s32 = sphi 0, %s30
      %s33 = sphi 0, %s31
      %s34 = sphi 0, %s32
      %s46 = sphi 0, %s48
      %s49 = sphi 0, %s46
      %s50 = sphi 0, %s49
      %s66 = sphi 0, %s50
      %s74 = sphi 0, %s76
      %s77 = sphi 0, %s74
      %s78 = sphi 0, %s77
      %s94 = sphi 0, %s78
      %s102 = sphi 0, %s104
      %s105 = sphi 0, %s102
      %s106 = sphi 0, %s105
      %s122 = sphi 0, %s106
      %s126 = sphi 0, %s126
      %s128 = sphi 0, %s126
      %s129 = sphi 0, %s128
      %s143 = sphi 0, %s129
      %s147 = sphi 0, %s147
      %s149 = sphi 0, %s147
      %s150 = sphi 0, %s149
      %s164 = sphi 0, %s150
      %s168 = sphi 0, %s168
      %s170 = sphi 0, %s168
      %s171 = sphi 0, %s170
      %s185 = sphi 0, %s171
      %s189 = sphi 0, %s189
      %s191 = sphi 0, %s189
      %s192 = sphi 0, %s191
      %s206 = sphi 0, %s192
      %s214 = sphi 0, %s216
      %s217 = sphi 0, %s214
      %s218 = sphi 0, %s217
      %s234 = sphi 0, %s218
    $region4: #{tpu_custom_call.1} parent=1 // loop_header_branch
      %25 = sbr.rel (%p23) target = $region8
    $region5: #{tpu_custom_call.1} parent=1 // loop_body
      %s27 = ssub.s32 %s22, 1
      %s28 = ssub.s32 %s22, 2
      %s35 = sadd.s32 1, %s30
      %p36 = scmp.ge.s32.totalorder %s35, 1
      %s37 = scalar_select %p36, 0, %s35
      %s38 = sadd.s32 1, %s29
      %s39 = scalar_select %p36, %s38, %s29
      %p40 = scmp.ge.s32.totalorder %s39, 2
      %s41 = scalar_select %p40, 0, %s39
      %s42 = ssub.s32 %s29, %s41
      %s43 = ssub.s32 %s30, %s37
      %s44 = sor.u32 %s42, %s43
      %p45 = scmp.eq.s32.totalorder %s44, 0
      %s47 = sadd.s32 %s46, 1
      %s48 = scalar_select %p45, %s46, %s47
      %p51 = pneg %p45
      %p52 = scmp.eq.s32.totalorder %s22, 1
      %p53 = por %p51, %p52
      %p54 = scmp.ne.s32.totalorder %s46, %s49
      %p55 = scmp.eq.s32.totalorder %s22, 0
      %p56 = por %p54, %p55
      %p57 = scmp.ne.s32.totalorder %s46, %s49
      %p58 = scmp.eq.s32.totalorder %s27, 1
      %p59 = por %p57, %p58
      %p60 = scmp.ne.s32.totalorder %s49, %s50
      %p61 = scmp.eq.s32.totalorder %s27, 0
      %p62 = por %p60, %p61
      %p63 = scmp.ne.s32.totalorder %s49, %s50
      %p64 = scmp.eq.s32.totalorder %s28, 1
      %p65 = por %p63, %p64
      %p67 = scmp.ne.s32.totalorder %s50, %s66
      %p68 = scmp.eq.s32.totalorder %s28, 0
      %p69 = por %p67, %p68
      %s70 = ssub.s32 %s29, %s41
      %s71 = ssub.s32 %s30, %s37
      %s72 = sor.u32 %s70, %s71
      %p73 = scmp.eq.s32.totalorder %s72, 0
      %s75 = sadd.s32 %s74, 1
      %s76 = scalar_select %p73, %s74, %s75
      %p79 = pneg %p73
      %p80 = scmp.eq.s32.totalorder %s22, 1
      %p81 = por %p79, %p80
      %p82 = scmp.ne.s32.totalorder %s74, %s77
      %p83 = scmp.eq.s32.totalorder %s22, 0
      %p84 = por %p82, %p83
      %p85 = scmp.ne.s32.totalorder %s74, %s77
      %p86 = scmp.eq.s32.totalorder %s27, 1
      %p87 = por %p85, %p86
      %p88 = scmp.ne.s32.totalorder %s77, %s78
      %p89 = scmp.eq.s32.totalorder %s27, 0
      %p90 = por %p88, %p89
      %p91 = scmp.ne.s32.totalorder %s77, %s78
      %p92 = scmp.eq.s32.totalorder %s28, 1
      %p93 = por %p91, %p92
      %p95 = scmp.ne.s32.totalorder %s78, %s94
      %p96 = scmp.eq.s32.totalorder %s28, 0
      %p97 = por %p95, %p96
      %s98 = ssub.s32 %s29, %s41
      %s99 = ssub.s32 %s30, %s37
      %s100 = sor.u32 %s98, %s99
      %p101 = scmp.eq.s32.totalorder %s100, 0
      %s103 = sadd.s32 %s102, 1
      %s104 = scalar_select %p101, %s102, %s103
      %p107 = pneg %p101
      %p108 = scmp.eq.s32.totalorder %s22, 1
      %p109 = por %p107, %p108
      %p110 = scmp.ne.s32.totalorder %s102, %s105
      %p111 = scmp.eq.s32.totalorder %s22, 0
      %p112 = por %p110, %p111
      %p113 = scmp.ne.s32.totalorder %s102, %s105
      %p114 = scmp.eq.s32.totalorder %s27, 1
      %p115 = por %p113, %p114
      %p116 = scmp.ne.s32.totalorder %s105, %s106
      %p117 = scmp.eq.s32.totalorder %s27, 0
      %p118 = por %p116, %p117
      %p119 = scmp.ne.s32.totalorder %s105, %s106
      %p120 = scmp.eq.s32.totalorder %s28, 1
      %p121 = por %p119, %p120
      %p123 = scmp.ne.s32.totalorder %s106, %s122
      %p124 = scmp.eq.s32.totalorder %s28, 0
      %p125 = por %p123, %p124
      %s127 = sadd.s32 %s126, 1
      %p130 = scmp.eq.s32.totalorder %s22, 1
      %p131 = scmp.ne.s32.totalorder %s126, %s128
      %p132 = scmp.eq.s32.totalorder %s22, 0
      %p133 = por %p131, %p132
      %p134 = scmp.ne.s32.totalorder %s126, %s128
      %p135 = scmp.eq.s32.totalorder %s27, 1
      %p136 = por %p134, %p135
      %p137 = scmp.ne.s32.totalorder %s128, %s129
      %p138 = scmp.eq.s32.totalorder %s27, 0
      %p139 = por %p137, %p138
      %p140 = scmp.ne.s32.totalorder %s128, %s129
      %p141 = scmp.eq.s32.totalorder %s28, 1
      %p142 = por %p140, %p141
      %p144 = scmp.ne.s32.totalorder %s129, %s143
      %p145 = scmp.eq.s32.totalorder %s28, 0
      %p146 = por %p144, %p145
      %s148 = sadd.s32 %s147, 1
      %p151 = scmp.eq.s32.totalorder %s22, 1
      %p152 = scmp.ne.s32.totalorder %s147, %s149
      %p153 = scmp.eq.s32.totalorder %s22, 0
      %p154 = por %p152, %p153
      %p155 = scmp.ne.s32.totalorder %s147, %s149
      %p156 = scmp.eq.s32.totalorder %s27, 1
      %p157 = por %p155, %p156
      %p158 = scmp.ne.s32.totalorder %s149, %s150
      %p159 = scmp.eq.s32.totalorder %s27, 0
      %p160 = por %p158, %p159
      %p161 = scmp.ne.s32.totalorder %s149, %s150
      %p162 = scmp.eq.s32.totalorder %s28, 1
      %p163 = por %p161, %p162
      %p165 = scmp.ne.s32.totalorder %s150, %s164
      %p166 = scmp.eq.s32.totalorder %s28, 0
      %p167 = por %p165, %p166
      %s169 = sadd.s32 %s168, 1
      %p172 = scmp.eq.s32.totalorder %s22, 1
      %p173 = scmp.ne.s32.totalorder %s168, %s170
      %p174 = scmp.eq.s32.totalorder %s22, 0
      %p175 = por %p173, %p174
      %p176 = scmp.ne.s32.totalorder %s168, %s170
      %p177 = scmp.eq.s32.totalorder %s27, 1
      %p178 = por %p176, %p177
      %p179 = scmp.ne.s32.totalorder %s170, %s171
      %p180 = scmp.eq.s32.totalorder %s27, 0
      %p181 = por %p179, %p180
      %p182 = scmp.ne.s32.totalorder %s170, %s171
      %p183 = scmp.eq.s32.totalorder %s28, 1
      %p184 = por %p182, %p183
      %p186 = scmp.ne.s32.totalorder %s171, %s185
      %p187 = scmp.eq.s32.totalorder %s28, 0
      %p188 = por %p186, %p187
      %s190 = sadd.s32 %s189, 1
      %p193 = scmp.eq.s32.totalorder %s22, 1
      %p194 = scmp.ne.s32.totalorder %s189, %s191
      %p195 = scmp.eq.s32.totalorder %s22, 0
      %p196 = por %p194, %p195
      %p197 = scmp.ne.s32.totalorder %s189, %s191
      %p198 = scmp.eq.s32.totalorder %s27, 1
      %p199 = por %p197, %p198
      %p200 = scmp.ne.s32.totalorder %s191, %s192
      %p201 = scmp.eq.s32.totalorder %s27, 0
      %p202 = por %p200, %p201
      %p203 = scmp.ne.s32.totalorder %s191, %s192
      %p204 = scmp.eq.s32.totalorder %s28, 1
      %p205 = por %p203, %p204
      %p207 = scmp.ne.s32.totalorder %s192, %s206
      %p208 = scmp.eq.s32.totalorder %s28, 0
      %p209 = por %p207, %p208
      %s210 = ssub.s32 %s29, %s41
      %s211 = ssub.s32 %s30, %s37
      %s212 = sor.u32 %s210, %s211
      %p213 = scmp.eq.s32.totalorder %s212, 0
      %s215 = sadd.s32 %s214, 1
      %s216 = scalar_select %p213, %s214, %s215
      %p219 = pneg %p213
      %p220 = scmp.eq.s32.totalorder %s22, 1
      %p221 = por %p219, %p220
      %p222 = scmp.ne.s32.totalorder %s214, %s217
      %p223 = scmp.eq.s32.totalorder %s22, 0
      %p224 = por %p222, %p223
      %p225 = scmp.ne.s32.totalorder %s214, %s217
      %p226 = scmp.eq.s32.totalorder %s27, 1
      %p227 = por %p225, %p226
      %p228 = scmp.ne.s32.totalorder %s217, %s218
      %p229 = scmp.eq.s32.totalorder %s27, 0
      %p230 = por %p228, %p229
      %p231 = scmp.ne.s32.totalorder %s217, %s218
      %p232 = scmp.eq.s32.totalorder %s28, 1
      %p233 = por %p231, %p232
      %p235 = scmp.ne.s32.totalorder %s218, %s234
      %p236 = scmp.eq.s32.totalorder %s28, 0
      %p237 = por %p235, %p236
      %p238 = scmp.le.s32.totalorder 1, %s22
      %p239 = scmp.lt.s32.totalorder %s22, 3
      %p240 = pnand %p238, %p239
      %p241 = pneg %p240
      // Predicated region
      $region9: #{tpu_custom_call.1} parent=5 // pred_check
        _
      $region10: #{tpu_custom_call.1} parent=5 // pred_check_branch
        %243 = sbr.rel (%p240) target = $region12
      $region11: #{tpu_custom_call.1} parent=5 // pred_region
        %s244 = ssub.s32 %s22, 1
        // Predicated region
        $region13: #{tpu_custom_call.1} parent=11 // pred_check
          %p245 = pneg %p139
        $region14: #{tpu_custom_call.1} parent=11 // pred_check_branch
          %247 = sbr.rel (%p245) target = $region16
        $region15: #{tpu_custom_call.1} parent=11 // pred_region
          _
        $region16: #{tpu_custom_call.1} parent=11 // pred_fallthru
          _
        // Predicated region
        $region17: #{tpu_custom_call.1} parent=11 // pred_check
          %p248 = pneg %p160
        $region18: #{tpu_custom_call.1} parent=11 // pred_check_branch
          %250 = sbr.rel (%p248) target = $region20
        $region19: #{tpu_custom_call.1} parent=11 // pred_region
          _
        $region20: #{tpu_custom_call.1} parent=11 // pred_fallthru
          _
        // Predicated region
        $region21: #{tpu_custom_call.1} parent=11 // pred_check
          %p251 = pneg %p181
        $region22: #{tpu_custom_call.1} parent=11 // pred_check_branch
          %253 = sbr.rel (%p251) target = $region24
        $region23: #{tpu_custom_call.1} parent=11 // pred_region
          _
        $region24: #{tpu_custom_call.1} parent=11 // pred_fallthru
          _
        // Predicated region
        $region25: #{tpu_custom_call.1} parent=11 // pred_check
          %p254 = pneg %p202
        $region26: #{tpu_custom_call.1} parent=11 // pred_check_branch
          %256 = sbr.rel (%p254) target = $region28
        $region27: #{tpu_custom_call.1} parent=11 // pred_region
          _
        $region28: #{tpu_custom_call.1} parent=11 // pred_fallthru
          _
      $region12: #{tpu_custom_call.1} parent=5 // pred_fallthru
        _
      %p257 = scmp.lt.s32.totalorder %s22, 2
      // Predicated region
      $region29: #{tpu_custom_call.1} parent=5 // pred_check
        %p258 = pneg %p257
      $region30: #{tpu_custom_call.1} parent=5 // pred_check_branch
        %260 = sbr.rel (%p258) target = $region32
      $region31: #{tpu_custom_call.1} parent=5 // pred_region
        // Predicated region
        $region33: #{tpu_custom_call.1} parent=31 // pred_check
          %p261 = pneg %p56
        $region34: #{tpu_custom_call.1} parent=31 // pred_check_branch
          %263 = sbr.rel (%p261) target = $region36
        $region35: #{tpu_custom_call.1} parent=31 // pred_region
          %s264 = sand.u32 %s46, 1
          %s265 = scalar_lea.sflag [#allocation3], %s264
          %s266 = sand.u32 %s46, 1
          %s267 = smul.addr %s266, 128
          %s268 = scalar_lea.vmem [#allocation2], %s267
          %s269 = smul.u32 4, %s30
          %271 = vsyncadd %s265, 0
          %s272 = smul.addr %s29, 16
          %s273 = sadd.s32 %s269, %s272
          %s274 = smul.addr %s273, 8
          %s275 = scalar_lea.hbm %s0, %s274
          %s276 = sshll.u32 %s275, 4
          %s277 = int_to_ptr.hbm [resolvable:$true] %s276
          %s278 = sshll.u32 %s268, 4
          %s279 = int_to_ptr.vmem [resolvable:$true] %s278
          %284 = dma.hbm_to_vmem [thread:$0]  %s277, 2048, %s279, %s265, 512, 512, 32
        $region36: #{tpu_custom_call.1} parent=31 // pred_fallthru
          _
        // Predicated region
        $region37: #{tpu_custom_call.1} parent=31 // pred_check
          %p285 = pneg %p84
        $region38: #{tpu_custom_call.1} parent=31 // pred_check_branch
          %287 = sbr.rel (%p285) target = $region40
        $region39: #{tpu_custom_call.1} parent=31 // pred_region
          %s288 = sand.u32 %s22, 1
          %s289 = scalar_lea.sflag [#allocation6], %s288
          %s290 = sand.u32 %s74, 1
          %s291 = smul.addr %s290, 128
          %s292 = scalar_lea.vmem [#allocation5], %s291
          %s293 = smul.u32 4, %s30
          %295 = vsyncadd %s289, 0
          %s296 = smul.addr %s29, 16
          %s297 = sadd.s32 %s293, %s296
          %s298 = smul.addr %s297, 8
          %s299 = scalar_lea.hbm %s1, %s298
          %s300 = sshll.u32 %s299, 4
          %s301 = int_to_ptr.hbm [resolvable:$true] %s300
          %s302 = sshll.u32 %s292, 4
          %s303 = int_to_ptr.vmem [resolvable:$true] %s302
          %308 = dma.hbm_to_vmem [thread:$0]  %s301, 2048, %s303, %s289, 512, 512, 32
        $region40: #{tpu_custom_call.1} parent=31 // pred_fallthru
          _
        // Predicated region
        $region41: #{tpu_custom_call.1} parent=31 // pred_check
          %p309 = pneg %p112
        $region42: #{tpu_custom_call.1} parent=31 // pred_check_branch
          %311 = sbr.rel (%p309) target = $region44
        $region43: #{tpu_custom_call.1} parent=31 // pred_region
          %s312 = sand.u32 %s22, 1
          %s313 = scalar_lea.sflag [#allocation6], %s312
          %s314 = sand.u32 %s102, 1
          %s315 = smul.addr %s314, 128
          %s316 = scalar_lea.vmem [#allocation7], %s315
          %s317 = smul.u32 4, %s30
          %319 = vsyncadd %s313, 0
          %s320 = smul.addr %s29, 16
          %s321 = sadd.s32 %s317, %s320
          %s322 = smul.addr %s321, 8
          %s323 = scalar_lea.hbm %s2, %s322
          %s324 = sshll.u32 %s323, 4
          %s325 = int_to_ptr.hbm [resolvable:$true] %s324
          %s326 = sshll.u32 %s316, 4
          %s327 = int_to_ptr.vmem [resolvable:$true] %s326
          %332 = dma.hbm_to_vmem [thread:$0]  %s325, 2048, %s327, %s313, 512, 512, 32
        $region44: #{tpu_custom_call.1} parent=31 // pred_fallthru
          _
      $region32: #{tpu_custom_call.1} parent=5 // pred_fallthru
        _
      %p333 = scmp.le.s32.totalorder 1, %s22
      %p334 = scmp.lt.s32.totalorder %s22, 3
      %p335 = pnand %p333, %p334
      %p336 = pneg %p335
      // Predicated region
      $region45: #{tpu_custom_call.1} parent=5 // pred_check
        _
      $region46: #{tpu_custom_call.1} parent=5 // pred_check_branch
        %338 = sbr.rel (%p335) target = $region48
      $region47: #{tpu_custom_call.1} parent=5 // pred_region
        %s339 = ssub.s32 %s22, 1
        %s340 = sand.u32 %s49, 1
        %s341 = scalar_lea.sflag [#allocation3], %s340
        %s342 = sand.u32 %s49, 1
        %s343 = smul.addr %s342, 128
        %s344 = scalar_lea.vmem [#allocation2], %s343
        // Predicated region
        $region49: #{tpu_custom_call.1} parent=47 // pred_check
          %p345 = pneg %p62
        $region50: #{tpu_custom_call.1} parent=47 // pred_check_branch
          %347 = sbr.rel (%p345) target = $region52
        $region51: #{tpu_custom_call.1} parent=47 // pred_region
          %349 = dma.done %s341, 2048
        $region52: #{tpu_custom_call.1} parent=47 // pred_fallthru
          _
        %s350 = sand.u32 %s27, 1
        %s351 = scalar_lea.sflag [#allocation6], %s350
        %s352 = sand.u32 %s77, 1
        %s353 = smul.addr %s352, 128
        %s354 = scalar_lea.vmem [#allocation5], %s353
        // Predicated region
        $region53: #{tpu_custom_call.1} parent=47 // pred_check
          %p355 = pneg %p90
        $region54: #{tpu_custom_call.1} parent=47 // pred_check_branch
          %357 = sbr.rel (%p355) target = $region56
        $region55: #{tpu_custom_call.1} parent=47 // pred_region
          %359 = dma.done %s351, 2048
        $region56: #{tpu_custom_call.1} parent=47 // pred_fallthru
          _
        %s360 = sand.u32 %s27, 1
        %s361 = scalar_lea.sflag [#allocation6], %s360
        %s362 = sand.u32 %s105, 1
        %s363 = smul.addr %s362, 128
        %s364 = scalar_lea.vmem [#allocation7], %s363
        // Predicated region
        $region57: #{tpu_custom_call.1} parent=47 // pred_check
          %p365 = pneg %p118
        $region58: #{tpu_custom_call.1} parent=47 // pred_check_branch
          %367 = sbr.rel (%p365) target = $region60
        $region59: #{tpu_custom_call.1} parent=47 // pred_region
          %369 = dma.done %s361, 2048
        $region60: #{tpu_custom_call.1} parent=47 // pred_fallthru
          _
        %s370 = sand.u32 %s49, 1
        %s371 = scalar_lea.sflag [#allocation3], %s370
        %s372 = sand.u32 %s49, 1
        %s373 = smul.addr %s372, 128
        %s374 = scalar_lea.vmem [#allocation2], %s373
        %p375 = pneg %p62
        %p376 = pneg %p59
        %s377 = sand.u32 %s27, 1
        %s378 = scalar_lea.sflag [#allocation6], %s377
        %s379 = sand.u32 %s77, 1
        %s380 = smul.addr %s379, 128
        %s381 = scalar_lea.vmem [#allocation5], %s380
        %p382 = pneg %p90
        %p383 = pneg %p87
        %s384 = sand.u32 %s27, 1
        %s385 = scalar_lea.sflag [#allocation6], %s384
        %s386 = sand.u32 %s105, 1
        %s387 = smul.addr %s386, 128
        %s388 = scalar_lea.vmem [#allocation7], %s387
        %p389 = pneg %p118
        %p390 = pneg %p115
        %p391 = pneg %p139
        %p392 = pneg %p136
        %p393 = pneg %p160
        %p394 = pneg %p157
        %p395 = pneg %p181
        %p396 = pneg %p178
        %p397 = pneg %p202
        %p398 = pneg %p199
        %p399 = pneg %p230
        %p400 = pneg %p227
        %s401 = sand.u32 %s217, 1
        %s402 = scalar_lea.sflag [#allocation4], %s401
        %s403 = sand.u32 %s217, 1
        %s404 = smul.addr %s403, 128
        %s405 = scalar_lea.vmem [#allocation8], %s404
        %s406 = smul.u32 4, %s32
        %s407 = smul.u32 4, %s32
        %s408 = smul.u32 4, %s32
        %s409 = smul.u32 4, %s32
        %v410 = vld [vmem:[%s344] sm:$0xff]
        %v411 = vld [vmem:[%s344 + $0x8] sm:$0xff]
        %v412 = vld [vmem:[%s344 + $0x10] sm:$0xff]
        %v413 = vld [vmem:[%s344 + $0x18] sm:$0xff]
        %v414 = vld [vmem:[%s344 + $0x20] sm:$0xff]
        %v415 = vld [vmem:[%s344 + $0x28] sm:$0xff]
        %v416 = vld [vmem:[%s344 + $0x30] sm:$0xff]
        %v417 = vld [vmem:[%s344 + $0x38] sm:$0xff]
        %v418 = vld [vmem:[%s344 + $0x40] sm:$0xff]
        %v419 = vld [vmem:[%s344 + $0x48] sm:$0xff]
        %v420 = vld [vmem:[%s344 + $0x50] sm:$0xff]
        %v421 = vld [vmem:[%s344 + $0x58] sm:$0xff]
        %v422 = vld [vmem:[%s344 + $0x60] sm:$0xff]
        %v423 = vld [vmem:[%s344 + $0x68] sm:$0xff]
        %v424 = vld [vmem:[%s344 + $0x70] sm:$0xff]
        %v425 = vld [vmem:[%s344 + $0x78] sm:$0xff]
        %v426 = vld [vmem:[%s354] sm:$0xff]
        %v427 = vld [vmem:[%s354 + $0x8] sm:$0xff]
        %v428 = vld [vmem:[%s354 + $0x10] sm:$0xff]
        %v429 = vld [vmem:[%s354 + $0x18] sm:$0xff]
        %v430 = vld [vmem:[%s354 + $0x20] sm:$0xff]
        %v431 = vld [vmem:[%s354 + $0x28] sm:$0xff]
        %v432 = vld [vmem:[%s354 + $0x30] sm:$0xff]
        %v433 = vld [vmem:[%s354 + $0x38] sm:$0xff]
        %v434 = vld [vmem:[%s354 + $0x40] sm:$0xff]
        %v435 = vld [vmem:[%s354 + $0x48] sm:$0xff]
        %v436 = vld [vmem:[%s354 + $0x50] sm:$0xff]
        %v437 = vld [vmem:[%s354 + $0x58] sm:$0xff]
        %v438 = vld [vmem:[%s354 + $0x60] sm:$0xff]
        %v439 = vld [vmem:[%s354 + $0x68] sm:$0xff]
        %v440 = vld [vmem:[%s354 + $0x70] sm:$0xff]
        %v441 = vld [vmem:[%s354 + $0x78] sm:$0xff]
        %v442 = vld [vmem:[%s364] sm:$0xff]
        %v443 = vld [vmem:[%s364 + $0x8] sm:$0xff]
        %v444 = vld [vmem:[%s364 + $0x10] sm:$0xff]
        %v445 = vld [vmem:[%s364 + $0x18] sm:$0xff]
        %v446 = vld [vmem:[%s364 + $0x20] sm:$0xff]
        %v447 = vld [vmem:[%s364 + $0x28] sm:$0xff]
        %v448 = vld [vmem:[%s364 + $0x30] sm:$0xff]
        %v449 = vld [vmem:[%s364 + $0x38] sm:$0xff]
        %v450 = vld [vmem:[%s364 + $0x40] sm:$0xff]
        %v451 = vld [vmem:[%s364 + $0x48] sm:$0xff]
        %v452 = vld [vmem:[%s364 + $0x50] sm:$0xff]
        %v453 = vld [vmem:[%s364 + $0x58] sm:$0xff]
        %v454 = vld [vmem:[%s364 + $0x60] sm:$0xff]
        %v455 = vld [vmem:[%s364 + $0x68] sm:$0xff]
        %v456 = vld [vmem:[%s364 + $0x70] sm:$0xff]
        %v457 = vld [vmem:[%s364 + $0x78] sm:$0xff]
        %v458 = vadd.f32 %v410, %v426
        %v459 = vadd.f32 %v411, %v427
        %v460 = vadd.f32 %v412, %v428
        %v461 = vadd.f32 %v413, %v429
        %v462 = vadd.f32 %v414, %v430
        %v463 = vadd.f32 %v415, %v431
        %v464 = vadd.f32 %v416, %v432
        %v465 = vadd.f32 %v417, %v433
        %v466 = vadd.f32 %v418, %v434
        %v467 = vadd.f32 %v419, %v435
        %v468 = vadd.f32 %v420, %v436
        %v469 = vadd.f32 %v421, %v437
        %v470 = vadd.f32 %v422, %v438
        %v471 = vadd.f32 %v423, %v439
        %v472 = vadd.f32 %v424, %v440
        %v473 = vadd.f32 %v425, %v441
        %v474 = vadd.f32 %v458, %v442
        %v475 = vadd.f32 %v459, %v443
        %v476 = vadd.f32 %v460, %v444
        %v477 = vadd.f32 %v461, %v445
        %v478 = vadd.f32 %v462, %v446
        %v479 = vadd.f32 %v463, %v447
        %v480 = vadd.f32 %v464, %v448
        %v481 = vadd.f32 %v465, %v449
        %v482 = vadd.f32 %v466, %v450
        %v483 = vadd.f32 %v467, %v451
        %v484 = vadd.f32 %v468, %v452
        %v485 = vadd.f32 %v469, %v453
        %v486 = vadd.f32 %v470, %v454
        %v487 = vadd.f32 %v471, %v455
        %v488 = vadd.f32 %v472, %v456
        %v489 = vadd.f32 %v473, %v457
        %v490 = vld [vmem:[%s3] sm:$0xff]
        %v491 = vld [vmem:[%s3 + $0x8] sm:$0xff]
        %v492 = vld [vmem:[%s3 + $0x10] sm:$0xff]
        %v493 = vld [vmem:[%s4] sm:$0xff]
        %v494 = vld [vmem:[%s4 + $0x8] sm:$0xff]
        %v495 = vld [vmem:[%s4 + $0x10] sm:$0xff]
        %497 = vset.pattern.permute.xlu0 0
        %498 = vperm.xlu0 %497, %v493
        %v499 = vpop.permute.xlu0 %498
        %502 = vset.pattern.permute.xlu0 0
        %503 = vperm.xlu0 %502, %v494
        %v504 = vpop.permute.xlu0 %503
        %507 = vset.pattern.permute.xlu0 0
        %508 = vperm.xlu0 %507, %v495
        %v509 = vpop.permute.xlu0 %508
        %vm511 = vcmask 261120
        %v513 = vsel %vm511, %v490, 0
        %v516 = vsel %vm511, %v491, 0
        %v519 = vsel %vm511, %v492, 0
        %521 = vmatpush.msra.mxu0 0.0
        %522 = vmatpush.msra.mxu0 0.0
        %523 = vmatpush.msra.mxu0 0.0
        %524 = vmatpush.msra.mxu0 0.0
        %525 = vmatpush.msra.mxu0 0.0
        %526 = vmatpush.msra.mxu0 0.0
        %527 = vmatpush.msra.mxu0 0.0
        %528 = vmatpush.msra.mxu0 0.0
        %529 = vmatpush.msra.mxu0 0.0
        %530 = vmatpush.msra.mxu0 0.0
        %531 = vmatpush.msra.mxu0 0.0
        %532 = vmatpush.msra.mxu0 0.0
        %533 = vmatpush.msra.mxu0 %v486
        %534 = vmatpush.msra.mxu0 %v482
        %535 = vmatpush.msra.mxu0 %v478
        %536 = vmatpush.msra.mxu0 %v474
        %537 = vmatmul.f32.gmra.mxu0 %v513
        %v538 = vpop.f32.mrf.mxu0
        %v539 = vadd.f32 %v499, %v538
        %540 = vmatmul.f32.gmra.mxu0 %v516
        %v541 = vpop.f32.mrf.mxu0
        %v542 = vadd.f32 %v504, %v541
        %543 = vmatmul.f32.gmra.mxu0 %v519
        %v544 = vpop.f32.mrf.mxu0
        %v545 = vadd.f32 %v509, %v544
        %546 = vdwg.mxu0
        %547 = vmatpush.msra.mxu0 0.0
        %548 = vmatpush.msra.mxu0 0.0
        %549 = vmatpush.msra.mxu0 0.0
        %550 = vmatpush.msra.mxu0 0.0
        %551 = vmatpush.msra.mxu0 0.0
        %552 = vmatpush.msra.mxu0 0.0
        %553 = vmatpush.msra.mxu0 0.0
        %554 = vmatpush.msra.mxu0 0.0
        %555 = vmatpush.msra.mxu0 0.0
        %556 = vmatpush.msra.mxu0 0.0
        %557 = vmatpush.msra.mxu0 0.0
        %558 = vmatpush.msra.mxu0 0.0
        %559 = vmatpush.msra.mxu0 %v487
        %560 = vmatpush.msra.mxu0 %v483
        %561 = vmatpush.msra.mxu0 %v479
        %562 = vmatpush.msra.mxu0 %v475
        %563 = vmatmul.f32.gmra.mxu0 %v513
        %v564 = vpop.f32.mrf.mxu0
        %v565 = vadd.f32 %v499, %v564
        %566 = vmatmul.f32.gmra.mxu0 %v516
        %v567 = vpop.f32.mrf.mxu0
        %v568 = vadd.f32 %v504, %v567
        %569 = vmatmul.f32.gmra.mxu0 %v519
        %v570 = vpop.f32.mrf.mxu0
        %v571 = vadd.f32 %v509, %v570
        %572 = vdwg.mxu0
        %573 = vmatpush.msra.mxu0 0.0
        %574 = vmatpush.msra.mxu0 0.0
        %575 = vmatpush.msra.mxu0 0.0
        %576 = vmatpush.msra.mxu0 0.0
        %577 = vmatpush.msra.mxu0 0.0
        %578 = vmatpush.msra.mxu0 0.0
        %579 = vmatpush.msra.mxu0 0.0
        %580 = vmatpush.msra.mxu0 0.0
        %581 = vmatpush.msra.mxu0 0.0
        %582 = vmatpush.msra.mxu0 0.0
        %583 = vmatpush.msra.mxu0 0.0
        %584 = vmatpush.msra.mxu0 0.0
        %585 = vmatpush.msra.mxu0 %v488
        %586 = vmatpush.msra.mxu0 %v484
        %587 = vmatpush.msra.mxu0 %v480
        %588 = vmatpush.msra.mxu0 %v476
        %589 = vmatmul.f32.gmra.mxu0 %v513
        %v590 = vpop.f32.mrf.mxu0
        %v591 = vadd.f32 %v499, %v590
        %592 = vmatmul.f32.gmra.mxu0 %v516
        %v593 = vpop.f32.mrf.mxu0
        %v594 = vadd.f32 %v504, %v593
        %595 = vmatmul.f32.gmra.mxu0 %v519
        %v596 = vpop.f32.mrf.mxu0
        %v597 = vadd.f32 %v509, %v596
        %598 = vdwg.mxu0
        %599 = vmatpush.msra.mxu0 0.0
        %600 = vmatpush.msra.mxu0 0.0
        %601 = vmatpush.msra.mxu0 0.0
        %602 = vmatpush.msra.mxu0 0.0
        %603 = vmatpush.msra.mxu0 0.0
        %604 = vmatpush.msra.mxu0 0.0
        %605 = vmatpush.msra.mxu0 0.0
        %606 = vmatpush.msra.mxu0 0.0
        %607 = vmatpush.msra.mxu0 0.0
        %608 = vmatpush.msra.mxu0 0.0
        %609 = vmatpush.msra.mxu0 0.0
        %610 = vmatpush.msra.mxu0 0.0
        %611 = vmatpush.msra.mxu0 %v489
        %612 = vmatpush.msra.mxu0 %v485
        %613 = vmatpush.msra.mxu0 %v481
        %614 = vmatpush.msra.mxu0 %v477
        %615 = vmatmul.f32.gmra.mxu0 %v513
        %v616 = vpop.f32.mrf.mxu0
        %v617 = vadd.f32 %v499, %v616
        %618 = vmatmul.f32.gmra.mxu0 %v516
        %v619 = vpop.f32.mrf.mxu0
        %v620 = vadd.f32 %v504, %v619
        %621 = vmatmul.f32.gmra.mxu0 %v519
        %v622 = vpop.f32.mrf.mxu0
        %v623 = vadd.f32 %v509, %v622
        %624 = vdwg.mxu0
        %v625 = vmax.f32 %v539, 0.0
        %v626 = vmax.f32 %v565, 0.0
        %v627 = vmax.f32 %v591, 0.0
        %v628 = vmax.f32 %v617, 0.0
        %v629 = vmax.f32 %v542, 0.0
        %v630 = vmax.f32 %v568, 0.0
        %v631 = vmax.f32 %v594, 0.0
        %v632 = vmax.f32 %v620, 0.0
        %v633 = vmax.f32 %v545, 0.0
        %v634 = vmax.f32 %v571, 0.0
        %v635 = vmax.f32 %v597, 0.0
        %v636 = vmax.f32 %v623, 0.0
        %v637 = vld [vmem:[%s5] sm:$0x7]
        %v638 = vld [vmem:[%s6] sm:$0x7]
        %640 = vset.pattern.permute.xlu0 0
        %641 = vperm.xlu0 %640, %v638
        %v642 = vpop.permute.xlu0 %641
        %vm644 = vcmask 195584
        %v646 = vsel %vm644, %v637, 0
        %648 = vmatpush.msra.mxu0 0.0
        %649 = vmatpush.msra.mxu0 0.0
        %650 = vmatpush.msra.mxu0 0.0
        %651 = vmatpush.msra.mxu0 0.0
        %652 = vmatpush.msra.mxu0 0.0
        %653 = vmatpush.msra.mxu0 0.0
        %654 = vmatpush.msra.mxu0 0.0
        %655 = vmatpush.msra.mxu0 0.0
        %656 = vmatpush.msra.mxu0 0.0
        %657 = vmatpush.msra.mxu0 0.0
        %658 = vmatpush.msra.mxu0 0.0
        %659 = vmatpush.msra.mxu0 0.0
        %660 = vmatpush.msra.mxu0 0.0
        %661 = vmatpush.msra.mxu0 %v633
        %662 = vmatpush.msra.mxu0 %v629
        %663 = vmatpush.msra.mxu0 %v625
        %664 = vmatmul.f32.gmra.mxu0 %v646
        %v665 = vpop.f32.mrf.mxu0
        %v666 = vadd.f32 %v642, %v665
        %667 = vdwg.mxu0
        %668 = vmatpush.msra.mxu0 0.0
        %669 = vmatpush.msra.mxu0 0.0
        %670 = vmatpush.msra.mxu0 0.0
        %671 = vmatpush.msra.mxu0 0.0
        %672 = vmatpush.msra.mxu0 0.0
        %673 = vmatpush.msra.mxu0 0.0
        %674 = vmatpush.msra.mxu0 0.0
        %675 = vmatpush.msra.mxu0 0.0
        %676 = vmatpush.msra.mxu0 0.0
        %677 = vmatpush.msra.mxu0 0.0
        %678 = vmatpush.msra.mxu0 0.0
        %679 = vmatpush.msra.mxu0 0.0
        %680 = vmatpush.msra.mxu0 0.0
        %681 = vmatpush.msra.mxu0 %v634
        %682 = vmatpush.msra.mxu0 %v630
        %683 = vmatpush.msra.mxu0 %v626
        %684 = vmatmul.f32.gmra.mxu0 %v646
        %v685 = vpop.f32.mrf.mxu0
        %v686 = vadd.f32 %v642, %v685
        %687 = vdwg.mxu0
        %688 = vmatpush.msra.mxu0 0.0
        %689 = vmatpush.msra.mxu0 0.0
        %690 = vmatpush.msra.mxu0 0.0
        %691 = vmatpush.msra.mxu0 0.0
        %692 = vmatpush.msra.mxu0 0.0
        %693 = vmatpush.msra.mxu0 0.0
        %694 = vmatpush.msra.mxu0 0.0
        %695 = vmatpush.msra.mxu0 0.0
        %696 = vmatpush.msra.mxu0 0.0
        %697 = vmatpush.msra.mxu0 0.0
        %698 = vmatpush.msra.mxu0 0.0
        %699 = vmatpush.msra.mxu0 0.0
        %700 = vmatpush.msra.mxu0 0.0
        %701 = vmatpush.msra.mxu0 %v635
        %702 = vmatpush.msra.mxu0 %v631
        %703 = vmatpush.msra.mxu0 %v627
        %704 = vmatmul.f32.gmra.mxu0 %v646
        %v705 = vpop.f32.mrf.mxu0
        %v706 = vadd.f32 %v642, %v705
        %707 = vdwg.mxu0
        %708 = vmatpush.msra.mxu0 0.0
        %709 = vmatpush.msra.mxu0 0.0
        %710 = vmatpush.msra.mxu0 0.0
        %711 = vmatpush.msra.mxu0 0.0
        %712 = vmatpush.msra.mxu0 0.0
        %713 = vmatpush.msra.mxu0 0.0
        %714 = vmatpush.msra.mxu0 0.0
        %715 = vmatpush.msra.mxu0 0.0
        %716 = vmatpush.msra.mxu0 0.0
        %717 = vmatpush.msra.mxu0 0.0
        %718 = vmatpush.msra.mxu0 0.0
        %719 = vmatpush.msra.mxu0 0.0
        %720 = vmatpush.msra.mxu0 0.0
        %721 = vmatpush.msra.mxu0 %v636
        %722 = vmatpush.msra.mxu0 %v632
        %723 = vmatpush.msra.mxu0 %v628
        %724 = vmatmul.f32.gmra.mxu0 %v646
        %v725 = vpop.f32.mrf.mxu0
        %v726 = vadd.f32 %v642, %v725
        %727 = vdwg.mxu0
        %v732 = vrot.slane %v666, 1
        %v733 = vrot.slane %v686, 1
        %v734 = vrot.slane %v706, 1
        %v735 = vrot.slane %v726, 1
        %v740 = vmax.f32 %v666, %v732
        %v741 = vmax.f32 %v686, %v733
        %v742 = vmax.f32 %v706, %v734
        %v743 = vmax.f32 %v726, %v735
        %v744 = vrot.slane %v666, 2
        %v745 = vrot.slane %v686, 2
        %v746 = vrot.slane %v706, 2
        %v747 = vrot.slane %v726, 2
        %v752 = vmax.f32 %v740, %v744
        %v753 = vmax.f32 %v741, %v745
        %v754 = vmax.f32 %v742, %v746
        %v755 = vmax.f32 %v743, %v747
        %v756 = vsub.f32 %v666, %v752
        %v757 = vsub.f32 %v686, %v753
        %v758 = vsub.f32 %v706, %v754
        %v759 = vsub.f32 %v726, %v755
        %v760 = vmul.f32 %v756, 1.442695
        %v761 = vpow.pop %v760
        %v762 = vmul.f32 %v757, 1.442695
        %v763 = vpow.pop %v762
        %v764 = vmul.f32 %v758, 1.442695
        %v765 = vpow.pop %v764
        %v766 = vmul.f32 %v759, 1.442695
        %v767 = vpow.pop %v766
        %v772 = vrot.slane %v752, 7
        %v773 = vrot.slane %v753, 7
        %v774 = vrot.slane %v754, 7
        %v775 = vrot.slane %v755, 7
        %v780 = vsub.f32 %v666, %v772
        %v781 = vsub.f32 %v686, %v773
        %v782 = vsub.f32 %v706, %v774
        %v783 = vsub.f32 %v726, %v775
        %v784 = vmul.f32 %v780, 1.442695
        %v785 = vpow.pop %v784
        %v786 = vmul.f32 %v781, 1.442695
        %v787 = vpow.pop %v786
        %v788 = vmul.f32 %v782, 1.442695
        %v789 = vpow.pop %v788
        %v790 = vmul.f32 %v783, 1.442695
        %v791 = vpow.pop %v790
        %v792 = vrot.slane %v752, 6
        %v793 = vrot.slane %v753, 6
        %v794 = vrot.slane %v754, 6
        %v795 = vrot.slane %v755, 6
        %v800 = vsub.f32 %v666, %v792
        %v801 = vsub.f32 %v686, %v793
        %v802 = vsub.f32 %v706, %v794
        %v803 = vsub.f32 %v726, %v795
        %v804 = vmul.f32 %v800, 1.442695
        %v805 = vpow.pop %v804
        %v806 = vmul.f32 %v801, 1.442695
        %v807 = vpow.pop %v806
        %v808 = vmul.f32 %v802, 1.442695
        %v809 = vpow.pop %v808
        %v810 = vmul.f32 %v803, 1.442695
        %v811 = vpow.pop %v810
        %v816 = vrot.slane %v785, 1
        %v817 = vrot.slane %v787, 1
        %v818 = vrot.slane %v789, 1
        %v819 = vrot.slane %v791, 1
        %v824 = vadd.f32 %v761, %v816
        %v825 = vadd.f32 %v763, %v817
        %v826 = vadd.f32 %v765, %v818
        %v827 = vadd.f32 %v767, %v819
        %v832 = vrot.slane %v805, 2
        %v833 = vrot.slane %v807, 2
        %v834 = vrot.slane %v809, 2
        %v835 = vrot.slane %v811, 2
        %v840 = vadd.f32 %v824, %v832
        %v841 = vadd.f32 %v825, %v833
        %v842 = vadd.f32 %v826, %v834
        %v843 = vadd.f32 %v827, %v835
        %v844 = vrcp.pop %v840
        %v845 = vrcp.pop %v841
        %v846 = vrcp.pop %v842
        %v847 = vrcp.pop %v843
        %v848 = vmul.f32 %v761, %v844
        %v849 = vmul.f32 %v763, %v845
        %v850 = vmul.f32 %v765, %v846
        %v851 = vmul.f32 %v767, %v847
        %v852 = vperm.slane %v848, 0
        %v853 = vperm.slane %v849, 0
        %v854 = vperm.slane %v850, 0
        %v855 = vperm.slane %v851, 0
        %v856 = vmul.f32 %v852, %v410
        %v857 = vmul.f32 %v853, %v411
        %v858 = vmul.f32 %v854, %v412
        %v859 = vmul.f32 %v855, %v413
        %v860 = vmul.f32 %v852, %v414
        %v861 = vmul.f32 %v853, %v415
        %v862 = vmul.f32 %v854, %v416
        %v863 = vmul.f32 %v855, %v417
        %v864 = vmul.f32 %v852, %v418
        %v865 = vmul.f32 %v853, %v419
        %v866 = vmul.f32 %v854, %v420
        %v867 = vmul.f32 %v855, %v421
        %v868 = vmul.f32 %v852, %v422
        %v869 = vmul.f32 %v853, %v423
        %v870 = vmul.f32 %v854, %v424
        %v871 = vmul.f32 %v855, %v425
        %v876 = vrot.slane %v844, 7
        %v877 = vrot.slane %v845, 7
        %v878 = vrot.slane %v846, 7
        %v879 = vrot.slane %v847, 7
        %v884 = vmul.f32 %v785, %v876
        %v885 = vmul.f32 %v787, %v877
        %v886 = vmul.f32 %v789, %v878
        %v887 = vmul.f32 %v791, %v879
        %v888 = vperm.slane %v884, 1
        %v889 = vperm.slane %v885, 1
        %v890 = vperm.slane %v886, 1
        %v891 = vperm.slane %v887, 1
        %v892 = vmul.f32 %v888, %v426
        %v893 = vmul.f32 %v889, %v427
        %v894 = vmul.f32 %v890, %v428
        %v895 = vmul.f32 %v891, %v429
        %v896 = vmul.f32 %v888, %v430
        %v897 = vmul.f32 %v889, %v431
        %v898 = vmul.f32 %v890, %v432
        %v899 = vmul.f32 %v891, %v433
        %v900 = vmul.f32 %v888, %v434
        %v901 = vmul.f32 %v889, %v435
        %v902 = vmul.f32 %v890, %v436
        %v903 = vmul.f32 %v891, %v437
        %v904 = vmul.f32 %v888, %v438
        %v905 = vmul.f32 %v889, %v439
        %v906 = vmul.f32 %v890, %v440
        %v907 = vmul.f32 %v891, %v441
        %v908 = vadd.f32 %v856, %v892
        %v909 = vadd.f32 %v857, %v893
        %v910 = vadd.f32 %v858, %v894
        %v911 = vadd.f32 %v859, %v895
        %v912 = vadd.f32 %v860, %v896
        %v913 = vadd.f32 %v861, %v897
        %v914 = vadd.f32 %v862, %v898
        %v915 = vadd.f32 %v863, %v899
        %v916 = vadd.f32 %v864, %v900
        %v917 = vadd.f32 %v865, %v901
        %v918 = vadd.f32 %v866, %v902
        %v919 = vadd.f32 %v867, %v903
        %v920 = vadd.f32 %v868, %v904
        %v921 = vadd.f32 %v869, %v905
        %v922 = vadd.f32 %v870, %v906
        %v923 = vadd.f32 %v871, %v907
        %v924 = vrot.slane %v844, 6
        %v925 = vrot.slane %v845, 6
        %v926 = vrot.slane %v846, 6
        %v927 = vrot.slane %v847, 6
        %v932 = vmul.f32 %v805, %v924
        %v933 = vmul.f32 %v807, %v925
        %v934 = vmul.f32 %v809, %v926
        %v935 = vmul.f32 %v811, %v927
        %v936 = vperm.slane %v932, 2
        %v937 = vperm.slane %v933, 2
        %v938 = vperm.slane %v934, 2
        %v939 = vperm.slane %v935, 2
        %v940 = vmul.f32 %v936, %v442
        %v941 = vmul.f32 %v937, %v443
        %v942 = vmul.f32 %v938, %v444
        %v943 = vmul.f32 %v939, %v445
        %v944 = vmul.f32 %v936, %v446
        %v945 = vmul.f32 %v937, %v447
        %v946 = vmul.f32 %v938, %v448
        %v947 = vmul.f32 %v939, %v449
        %v948 = vmul.f32 %v936, %v450
        %v949 = vmul.f32 %v937, %v451
        %v950 = vmul.f32 %v938, %v452
        %v951 = vmul.f32 %v939, %v453
        %v952 = vmul.f32 %v936, %v454
        %v953 = vmul.f32 %v937, %v455
        %v954 = vmul.f32 %v938, %v456
        %v955 = vmul.f32 %v939, %v457
        %v956 = vadd.f32 %v908, %v940
        %v957 = vadd.f32 %v909, %v941
        %v958 = vadd.f32 %v910, %v942
        %v959 = vadd.f32 %v911, %v943
        %v960 = vadd.f32 %v912, %v944
        %v961 = vadd.f32 %v913, %v945
        %v962 = vadd.f32 %v914, %v946
        %v963 = vadd.f32 %v915, %v947
        %v964 = vadd.f32 %v916, %v948
        %v965 = vadd.f32 %v917, %v949
        %v966 = vadd.f32 %v918, %v950
        %v967 = vadd.f32 %v919, %v951
        %v968 = vadd.f32 %v920, %v952
        %v969 = vadd.f32 %v921, %v953
        %v970 = vadd.f32 %v922, %v954
        %v971 = vadd.f32 %v923, %v955
        %972 = vst [vmem:[%s405] sm:$0xff] %v956
        %973 = vst [vmem:[%s405 + $0x8] sm:$0xff] %v957
        %974 = vst [vmem:[%s405 + $0x10] sm:$0xff] %v958
        %975 = vst [vmem:[%s405 + $0x18] sm:$0xff] %v959
        %976 = vst [vmem:[%s405 + $0x20] sm:$0xff] %v960
        %977 = vst [vmem:[%s405 + $0x28] sm:$0xff] %v961
        %978 = vst [vmem:[%s405 + $0x30] sm:$0xff] %v962
        %979 = vst [vmem:[%s405 + $0x38] sm:$0xff] %v963
        %980 = vst [vmem:[%s405 + $0x40] sm:$0xff] %v964
        %981 = vst [vmem:[%s405 + $0x48] sm:$0xff] %v965
        %982 = vst [vmem:[%s405 + $0x50] sm:$0xff] %v966
        %983 = vst [vmem:[%s405 + $0x58] sm:$0xff] %v967
        %984 = vst [vmem:[%s405 + $0x60] sm:$0xff] %v968
        %985 = vst [vmem:[%s405 + $0x68] sm:$0xff] %v969
        %986 = vst [vmem:[%s405 + $0x70] sm:$0xff] %v970
        %987 = vst [vmem:[%s405 + $0x78] sm:$0xff] %v971
        %s988 = sand.u32 %s217, 1
        %s989 = scalar_lea.sflag [#allocation4], %s988
        %s990 = sand.u32 %s217, 1
        %s991 = smul.addr %s990, 128
        %s992 = scalar_lea.vmem [#allocation8], %s991
        // Predicated region
        $region61: #{tpu_custom_call.1} parent=47 // pred_check
          %p993 = pneg %p227
        $region62: #{tpu_custom_call.1} parent=47 // pred_check_branch
          %995 = sbr.rel (%p993) target = $region64
        $region63: #{tpu_custom_call.1} parent=47 // pred_region
          %s996 = smul.u32 4, %s32
          %998 = vsyncadd %s989, 0
          %s999 = smul.addr %s31, 16
          %s1000 = sadd.s32 %s996, %s999
          %s1001 = smul.addr %s1000, 8
          %s1002 = scalar_lea.hbm %s7, %s1001
          %s1003 = sshll.u32 %s992, 4
          %s1004 = int_to_ptr.vmem [resolvable:$true] %s1003
          %s1005 = sshll.u32 %s1002, 4
          %s1006 = int_to_ptr.hbm [resolvable:$true] %s1005
          %1011 = dma.vmem_to_hbm [thread:$0]  %s1004, 2048, %s1006, %s989, 512, 512, 32
        $region64: #{tpu_custom_call.1} parent=47 // pred_fallthru
          _
      $region48: #{tpu_custom_call.1} parent=5 // pred_fallthru
        _
      %p1012 = scmp.le.s32.totalorder 2, %s22
      // Predicated region
      $region65: #{tpu_custom_call.1} parent=5 // pred_check
        %p1013 = pneg %p1012
      $region66: #{tpu_custom_call.1} parent=5 // pred_check_branch
        %1015 = sbr.rel (%p1013) target = $region68
      $region67: #{tpu_custom_call.1} parent=5 // pred_region
        %s1016 = ssub.s32 %s22, 2
        // Predicated region
        $region69: #{tpu_custom_call.1} parent=67 // pred_check
          %p1017 = pneg %p233
        $region70: #{tpu_custom_call.1} parent=67 // pred_check_branch
          %1019 = sbr.rel (%p1017) target = $region72
        $region71: #{tpu_custom_call.1} parent=67 // pred_region
          %s1020 = sand.u32 %s218, 1
          %s1021 = scalar_lea.sflag [#allocation4], %s1020
          %s1022 = sand.u32 %s218, 1
          %s1023 = smul.addr %s1022, 128
          %s1024 = scalar_lea.vmem [#allocation8], %s1023
          %1026 = dma.done %s1021, 2048
        $region72: #{tpu_custom_call.1} parent=67 // pred_fallthru
          _
      $region68: #{tpu_custom_call.1} parent=5 // pred_fallthru
        _
    $region6: #{tpu_custom_call.1} parent=1 // loop_footer
      %s26 = sadd.s32 1, %s22
    $region7: #{tpu_custom_call.1} parent=1 // loop_footer_branch
      %21 = sbr.rel target = $region3
    $region8: #{tpu_custom_call.1} parent=1 // loop_exit
      _
    %1027 = vsyncpa [#allocation3], 1
    %s1028 = scalar_lea.sflag [#allocation3], 1
    %1029 = vsyncpa %s1028, 1
    %1030 = vsyncpa [#allocation6], 1
    %s1031 = scalar_lea.sflag [#allocation6], 1
    %1032 = vsyncpa %s1031, 1
    %1033 = vsyncpa [#allocation4], 1
    %s1034 = scalar_lea.sflag [#allocation4], 1
    %1035 = vsyncpa %s1034, 1

</llo_original>
